<compile_context>
chip_gen: v6e
topology: v6e:2x2x1
jax: 0.10.0
libtpu: 0.0.40
codegen_flags: <defaults>
</compile_context>

<pallas_src>
import jax
import jax.numpy as jnp
from jax.experimental import pallas as pl
from jax.experimental.pallas import tpu as pltpu


# ---------------------------------------------------------------------------
# in-kernel helpers (elementwise work stays f32; only MXU inputs get cast)
# ---------------------------------------------------------------------------

def _leaky_relu(h):
    # PyTorch nn.LeakyReLU default negative_slope = 0.01
    return jnp.where(h > 0, h, 0.01 * h)


def _encode(x, we1, be1, we2, be2):
    h = jnp.dot(x.astype(we1.dtype), we1, preferred_element_type=jnp.float32) + be1
    h = _leaky_relu(h)
    z = jnp.dot(h.astype(we2.dtype), we2, preferred_element_type=jnp.float32) + be2
    return jax.nn.sigmoid(z)


def _decode(z, wd1, bd1, wd2, bd2):
    h = jnp.dot(z.astype(wd1.dtype), wd1, preferred_element_type=jnp.float32) + bd1
    h = _leaky_relu(h)
    xr = jnp.dot(h.astype(wd2.dtype), wd2, preferred_element_type=jnp.float32) + bd2
    return jax.nn.sigmoid(xr)


# ---------------------------------------------------------------------------
# kernels
# ---------------------------------------------------------------------------

def _encoder_kernel(x_ref, we1_ref, be1_ref, we2_ref, be2_ref, z_ref):
    z_ref[...] = _encode(x_ref[...], we1_ref[...], be1_ref[...],
                         we2_ref[...], be2_ref[...]).astype(z_ref.dtype)


def _selfexp_kernel(coef_ref, knn_ref, z_ref, zse_ref):
    coef = coef_ref[...]
    keep = jnp.logical_and(knn_ref[...] != 0, coef > 0)
    masked = jnp.where(keep, coef, jnp.zeros_like(coef))
    zse_ref[...] = jnp.dot(masked, z_ref[...],
                           preferred_element_type=jnp.float32).astype(zse_ref.dtype)


def _decode_reencode_kernel(zse_ref, wd1_ref, bd1_ref, wd2_ref, bd2_ref,
                            we1_ref, be1_ref, we2_ref, be2_ref,
                            xrec_ref, zrec_ref):
    xrec = _decode(zse_ref[...], wd1_ref[...], bd1_ref[...],
                   wd2_ref[...], bd2_ref[...])
    zrec = _encode(xrec, we1_ref[...], be1_ref[...], we2_ref[...], be2_ref[...])
    xrec_ref[...] = xrec.astype(xrec_ref.dtype)
    zrec_ref[...] = zrec.astype(zrec_ref.dtype)


def _decoder_kernel(zse_ref, wd1_ref, bd1_ref, wd2_ref, bd2_ref, xrec_ref):
    xrec_ref[...] = _decode(zse_ref[...], wd1_ref[...], bd1_ref[...],
                            wd2_ref[...], bd2_ref[...]).astype(xrec_ref.dtype)


# ---------------------------------------------------------------------------
# VMEM budgeting / tile selection
# ---------------------------------------------------------------------------

_LANE = 128                                       # feature dims padded to lane multiples
_TILE_CANDIDATES = (32, 64, 128, 256, 512, 1024)  # row tiles: powers of two x 32


def _round_up(x, m):
    return ((x + m - 1) // m) * m


def _vmem_limit_bytes():
    """Generation-aware per-core VMEM limit (v5e/v6e ~100 MiB, v7x ~48 MiB)."""
    try:
        cap = int(pltpu.get_tpu_info().vmem_capacity_bytes)
    except Exception:
        cap = 64 << 20      # unknown -> assume the smallest (v7x per-TC)
    return max(32 << 20, min(cap - (16 << 20), 100 << 20))


def _row_cap(budget, fixed_bytes, per_row_bytes):
    avail = budget - fixed_bytes
    if avail <= 0:
        return _TILE_CANDIDATES[0]
    return max(_TILE_CANDIDATES[0], avail // max(per_row_bytes, 1))


def _pick_tile(n_rows, cap_rows):
    """Largest candidate tile <= cap_rows, never exceeding the smallest candidate
    that already covers n_rows (avoids gross over-padding of tiny problems)."""
    n_clamp = next((c for c in _TILE_CANDIDATES if c >= n_rows), _TILE_CANDIDATES[-1])
    tile = _TILE_CANDIDATES[0]
    for c in _TILE_CANDIDATES:
        if c <= cap_rows and c <= n_clamp:
            tile = c
    return tile


def _pad2(a, rows, cols):
    return jnp.pad(a, ((0, rows - a.shape[0]), (0, cols - a.shape[1])))


# ---------------------------------------------------------------------------
# pallas_call wrappers
# ---------------------------------------------------------------------------

def _run_encoders(x_stack, we1, be1, we2, be2, *, tile_n, vmem_limit):
    """All K encoders; output written straight into the (n_pad, K*d2p) latent slab."""
    K, n_pad, d0p = x_stack.shape
    d1p = we1.shape[2]
    d2p = we2.shape[2]
    grid = (K, n_pad // tile_n)
    return pl.pallas_call(
        _encoder_kernel,
        out_shape=jax.ShapeDtypeStruct((n_pad, K * d2p), jnp.float32),
        grid_spec=pltpu.PrefetchScalarGridSpec(
            num_scalar_prefetch=0,
            grid=grid,
            in_specs=[
                pl.BlockSpec((None, tile_n, d0p), lambda k, i: (k, i, 0)),
                pl.BlockSpec((None, d0p, d1p), lambda k, i: (k, 0, 0)),
                pl.BlockSpec((None, 1, d1p), lambda k, i: (k, 0, 0)),
                pl.BlockSpec((None, d1p, d2p), lambda k, i: (k, 0, 0)),
                pl.BlockSpec((None, 1, d2p), lambda k, i: (k, 0, 0)),
            ],
            out_specs=pl.BlockSpec((tile_n, d2p), lambda k, i: (i, k)),
        ),
        compiler_params=pltpu.CompilerParams(
            dimension_semantics=("parallel", "parallel"),
            vmem_limit_bytes=vmem_limit,
        ),
    )(x_stack, we1, be1, we2, be2)


def _run_self_expression(coef, knn_mask, z_cat, *, tile_n, vmem_limit):
    """Single masked coef @ Z pass over the lane-concatenated latents."""
    n_pad = coef.shape[0]
    dcat = z_cat.shape[1]
    grid = (n_pad // tile_n,)
    return pl.pallas_call(
        _selfexp_kernel,
        out_shape=jax.ShapeDtypeStruct((n_pad, dcat), jnp.float32),
        grid_spec=pltpu.PrefetchScalarGridSpec(
            num_scalar_prefetch=0,
            grid=grid,
            in_specs=[
                pl.BlockSpec((tile_n, n_pad), lambda i: (i, 0)),   # coef row strip
                pl.BlockSpec((tile_n, n_pad), lambda i: (i, 0)),   # int8 knn>0 strip
                pl.BlockSpec((n_pad, dcat), lambda i: (0, 0)),     # resident latents
            ],
            out_specs=pl.BlockSpec((tile_n, dcat), lambda i: (i, 0)),
        ),
        compiler_params=pltpu.CompilerParams(
            dimension_semantics=("parallel",),
            vmem_limit_bytes=vmem_limit,
        ),
    )(coef, knn_mask, z_cat)


def _run_decode_reencode(zse_cat, wd1, bd1, wd2, bd2, we1, be1, we2, be2, *,
                         tile_n, vmem_limit):
    """Fused decode + re-encode for all K views (weights fit VMEM)."""
    K, d2p, d1p = wd1.shape
    d0p = wd2.shape[2]
    n_pad = zse_cat.shape[0]
    grid = (K, n_pad // tile_n)
    return pl.pallas_call(
        _decode_reencode_kernel,
        out_shape=(jax.ShapeDtypeStruct((K, n_pad, d0p), jnp.float32),
                   jax.ShapeDtypeStruct((n_pad, K * d2p), jnp.float32)),
        grid_spec=pltpu.PrefetchScalarGridSpec(
            num_scalar_prefetch=0,
            grid=grid,
            in_specs=[
                pl.BlockSpec((tile_n, d2p), lambda k, i: (i, k)),       # zse column strip
                pl.BlockSpec((None, d2p, d1p), lambda k, i: (k, 0, 0)),
                pl.BlockSpec((None, 1, d1p), lambda k, i: (k, 0, 0)),
                pl.BlockSpec((None, d1p, d0p), lambda k, i: (k, 0, 0)),
                pl.BlockSpec((None, 1, d0p), lambda k, i: (k, 0, 0)),
                pl.BlockSpec((None, d0p, d1p), lambda k, i: (k, 0, 0)),
                pl.BlockSpec((None, 1, d1p), lambda k, i: (k, 0, 0)),
                pl.BlockSpec((None, d1p, d2p), lambda k, i: (k, 0, 0)),
                pl.BlockSpec((None, 1, d2p), lambda k, i: (k, 0, 0)),
            ],
            out_specs=(pl.BlockSpec((None, tile_n, d0p), lambda k, i: (k, i, 0)),
                       pl.BlockSpec((tile_n, d2p), lambda k, i: (i, k))),
        ),
        compiler_params=pltpu.CompilerParams(
            dimension_semantics=("parallel", "parallel"),
            vmem_limit_bytes=vmem_limit,
        ),
    )(zse_cat, wd1, bd1, wd2, bd2, we1, be1, we2, be2)


def _run_decoders_only(zse_cat, wd1, bd1, wd2, bd2, *, tile_n, vmem_limit):
    """Decode-only fallback (used when the fused weight set would blow VMEM)."""
    K, d2p, d1p = wd1.shape
    d0p = wd2.shape[2]
    n_pad = zse_cat.shape[0]
    grid = (K, n_pad // tile_n)
    return pl.pallas_call(
        _decoder_kernel,
        out_shape=jax.ShapeDtypeStruct((K, n_pad, d0p), jnp.float32),
        grid_spec=pltpu.PrefetchScalarGridSpec(
            num_scalar_prefetch=0,
            grid=grid,
            in_specs=[
                pl.BlockSpec((tile_n, d2p), lambda k, i: (i, k)),
                pl.BlockSpec((None, d2p, d1p), lambda k, i: (k, 0, 0)),
                pl.BlockSpec((None, 1, d1p), lambda k, i: (k, 0, 0)),
                pl.BlockSpec((None, d1p, d0p), lambda k, i: (k, 0, 0)),
                pl.BlockSpec((None, 1, d0p), lambda k, i: (k, 0, 0)),
            ],
            out_specs=pl.BlockSpec((None, tile_n, d0p), lambda k, i: (k, i, 0)),
        ),
        compiler_params=pltpu.CompilerParams(
            dimension_semantics=("parallel", "parallel"),
            vmem_limit_bytes=vmem_limit,
        ),
    )(zse_cat, wd1, bd1, wd2, bd2)


# ---------------------------------------------------------------------------
# parameter packing (hoistable) + full forward
# ---------------------------------------------------------------------------

def pack_dmscnet_params(cae_params, knn, *, compute_dtype=jnp.bfloat16):
    """One-time (per parameter update) layout plumbing: pad feature dims to lane
    multiples, stack the K views, cast MXU operands to compute_dtype, build the
    static int8 knn>0 mask, and solve footprint-derived row tiles against the
    per-core VMEM limit.  Hoist this out of the training step's hot path."""
    K = len(cae_params)
    n = knn.shape[0]

    dims = []
    for k in range(K):
        (we1, _, we2, _), _ = cae_params[k]
        dims.append((we1.shape[0], we1.shape[1], we2.shape[1]))   # (d0, d1, d2)
    d0p = _round_up(max(d[0] for d in dims), _LANE)
    d1p = _round_up(max(d[1] for d in dims), _LANE)
    d2p = _round_up(max(d[2] for d in dims), _LANE)
    dcat = K * d2p

    cdt = jnp.dtype(compute_dtype)
    c, f = cdt.itemsize, 4

    vmem_limit = _vmem_limit_bytes()
    budget = int(vmem_limit * 0.85)          # slack for compiler-internal scratch

    # Per-grid-step VMEM footprints (x2 = double-buffered pipeline blocks).
    enc_fixed = 2 * (d0p * d1p * c + d1p * f + d1p * d2p * c + d2p * f)
    enc_per_row = 2 * (d0p * c + d2p * f)
    tile_enc = _pick_tile(n, _row_cap(budget, enc_fixed, enc_per_row))

    dec_fused_fixed = 2 * (d2p * d1p * c + d1p * f + d1p * d0p * c + d0p * f +
                           d0p * d1p * c + d1p * f + d1p * d2p * c + d2p * f)
    dec_fused_per_row = 2 * (d2p * f + d0p * f + d2p * f)
    dec_only_fixed = 2 * (d2p * d1p * c + d1p * f + d1p * d0p * c + d0p * f)
    dec_only_per_row = 2 * (d2p * f + d0p * f)
    fuse_decoder = dec_fused_fixed <= budget // 2
    if fuse_decoder:
        tile_dec = _pick_tile(n, _row_cap(budget, dec_fused_fixed, dec_fused_per_row))
    else:
        tile_dec = _pick_tile(n, _row_cap(budget, dec_only_fixed, dec_only_per_row))

    n8 = _round_up(n, _TILE_CANDIDATES[0])
    se_fixed = 2 * n8 * dcat * c                        # resident z_cat block
    se_per_row = 2 * (n8 * c + n8 * 1 + dcat * f)       # coef + int8 mask strips + out
    tile_se = _pick_tile(n, _row_cap(budget, se_fixed, se_per_row))

    # One common row padding; all tiles are powers-of-two x 32 so they divide it.
    n_pad = _round_up(n, max(_LANE, tile_enc, tile_dec, tile_se))

    def stack(half, idx, rows, cols, dtype):
        return jnp.stack([_pad2(cae_params[k][half][idx], rows, cols)
                          for k in range(K)]).astype(dtype)

    return dict(
        K=K, n=n, n_pad=n_pad, dims=dims, d0p=d0p, d1p=d1p, d2p=d2p, dcat=dcat,
        compute_dtype=cdt, vmem_limit=vmem_limit,
        tile_enc=tile_enc, tile_dec=tile_dec, tile_se=tile_se,
        fuse_decoder=fuse_decoder,
        # MXU weights in compute dtype; biases stay f32 (VPU adds in f32)
        we1=stack(0, 0, d0p, d1p, cdt), be1=stack(0, 1, 1, d1p, jnp.float32),
        we2=stack(0, 2, d1p, d2p, cdt), be2=stack(0, 3, 1, d2p, jnp.float32),
        wd1=stack(1, 0, d2p, d1p, cdt), bd1=stack(1, 1, 1, d1p, jnp.float32),
        wd2=stack(1, 2, d1p, d0p, cdt), bd2=stack(1, 3, 1, d0p, jnp.float32),
        # static knn>0 mask as int8 (padded rows/cols are zero -> never selected)
        knn_mask=_pad2((knn > 0).astype(jnp.int8), n_pad, n_pad),
    )


def dmscnet_forward(X, cae_params, coef, knn, *,
                    compute_dtype=jnp.bfloat16, packed=None):
    """DMSCNet.forward over K omics views, fused into 3 (or 4) pallas_calls.

    Pass `packed=pack_dmscnet_params(...)` explicitly to hoist the parameter
    padding / stacking / casting out of the per-step hot path."""
    if packed is None:
        packed = pack_dmscnet_params(cae_params, knn, compute_dtype=compute_dtype)

    K, n, n_pad = packed["K"], packed["n"], packed["n_pad"]
    d0p, d2p = packed["d0p"], packed["d2p"]
    cdt = packed["compute_dtype"]
    vlim = packed["vmem_limit"]

    # Per-forward operand padding (fuses with the rest when jitted).
    x_stack = jnp.stack([_pad2(X[k], n_pad, d0p) for k in range(K)]).astype(cdt)
    coef_p = _pad2(coef, n_pad, n_pad).astype(cdt)

    # 1) all K encoders -> lane-concatenated latent slab (n_pad, K*d2p), f32
    z_cat = _run_encoders(x_stack, packed["we1"], packed["be1"],
                          packed["we2"], packed["be2"],
                          tile_n=packed["tile_enc"], vmem_limit=vlim)

    # 2) single masked coef @ Z pass (coef in compute dtype, knn mask int8)
    zse_cat = _run_self_expression(coef_p, packed["knn_mask"], z_cat.astype(cdt),
                                   tile_n=packed["tile_se"], vmem_limit=vlim)

    # 3) decode + re-encode (fused when the full weight set fits VMEM, else split)
    if packed["fuse_decoder"]:
        xrec_stack, zrec_cat = _run_decode_reencode(
            zse_cat, packed["wd1"], packed["bd1"], packed["wd2"], packed["bd2"],
            packed["we1"], packed["be1"], packed["we2"], packed["be2"],
            tile_n=packed["tile_dec"], vmem_limit=vlim)
    else:
        xrec_stack = _run_decoders_only(
            zse_cat, packed["wd1"], packed["bd1"], packed["wd2"], packed["bd2"],
            tile_n=packed["tile_dec"], vmem_limit=vlim)
        zrec_cat = _run_encoders(xrec_stack, packed["we1"], packed["be1"],
                                 packed["we2"], packed["be2"],
                                 tile_n=packed["tile_enc"], vmem_limit=vlim)

    Z, Z_selfExp, X_recon, Z_recon = [], [], [], []
    for k in range(K):
        d0, _, d2 = packed["dims"][k]
        col = k * d2p
        Z.append(z_cat[:n, col:col + d2])
        Z_selfExp.append(zse_cat[:n, col:col + d2])
        X_recon.append(xrec_stack[k, :n, :d0])
        Z_recon.append(zrec_cat[:n, col:col + d2])
    return Z, Z_selfExp, X_recon, Z_recon


# ---------------------------------------------------------------------------
# pure-JAX reference (correctness check) and deterministic init
# ---------------------------------------------------------------------------

def _reference_forward(X, cae_params, coef, knn):
    hi = jax.lax.Precision.HIGHEST

    def enc(x, p):
        we1, be1, we2, be2 = p
        h = jnp.matmul(x, we1, precision=hi) + be1
        h = jnp.where(h > 0, h, 0.01 * h)
        return jax.nn.sigmoid(jnp.matmul(h, we2, precision=hi) + be2)

    def dec(z, p):
        wd1, bd1, wd2, bd2 = p
        h = jnp.matmul(z, wd1, precision=hi) + bd1
        h = jnp.where(h > 0, h, 0.01 * h)
        return jax.nn.sigmoid(jnp.matmul(h, wd2, precision=hi) + bd2)

    masked = jnp.where((knn > 0) & (coef > 0), coef, 0.0)
    Z, ZS, XR, ZR = [], [], [], []
    for k, x in enumerate(X):
        encp, decp = cae_params[k]
        z = enc(x, encp)
        zs = jnp.matmul(masked, z, precision=hi)
        xr = dec(zs, decp)
        zr = enc(xr, encp)
        Z.append(z); ZS.append(zs); XR.append(xr); ZR.append(zr)
    return Z, ZS, XR, ZR


def _init_linear(key, d_in, d_out):
    kw, kb = jax.random.split(key)
    bound = 1.0 / jnp.sqrt(jnp.float32(d_in))
    w = jax.random.uniform(kw, (d_in, d_out), jnp.float32, -bound, bound)
    b = jax.random.uniform(kb, (1, d_out), jnp.float32, -bound, bound)
    return w, b


def _init_cycle_ae(key, dims):
    d0, d1, d2 = dims
    k1, k2, k3, k4 = jax.random.split(key, 4)
    we1, be1 = _init_linear(k1, d0, d1)
    we2, be2 = _init_linear(k2, d1, d2)
    wd1, bd1 = _init_linear(k3, d2, d1)
    wd2, bd2 = _init_linear(k4, d1, d0)
    return (we1, be1, we2, be2), (wd1, bd1, wd2, bd2)


if __name__ == "__main__":
    key = jax.random.PRNGKey(0)

    # Small synthetic config consistent with DMSCNet.__init__:
    num_omics = 2                        # K
    num_samples = 8                      # n
    input_dims = [[16, 32, 8],           # per-omics [d_in, d_hidden, d_latent]
                  [24, 32, 8]]

    kx0, kx1, kknn, kp0, kp1 = jax.random.split(key, 5)
    X = [jax.random.uniform(kx0, (num_samples, input_dims[0][0]), jnp.float32),
         jax.random.uniform(kx1, (num_samples, input_dims[1][0]), jnp.float32)]
    coef = 1e-8 * jnp.ones((num_samples, num_samples), dtype=jnp.float32)
    knn = (jax.random.uniform(kknn, (num_samples, num_samples)) > 0.5).astype(jnp.float32)
    cae_params = [_init_cycle_ae(kp0, input_dims[0]),
                  _init_cycle_ae(kp1, input_dims[1])]

    rZ, rZS, rXR, rZR = _reference_forward(X, cae_params, coef, knn)

    def _check(out, tol):
        Z, ZS, XR, ZR = out
        for k in range(num_omics):
            d0, _, d2 = input_dims[k]
            assert Z[k].shape == (num_samples, d2)
            assert ZS[k].shape == (num_samples, d2)
            assert XR[k].shape == (num_samples, d0)
            assert ZR[k].shape == (num_samples, d2)
            assert jnp.allclose(Z[k], rZ[k], atol=tol, rtol=tol)
            assert jnp.allclose(ZS[k], rZS[k], atol=tol, rtol=tol)
            assert jnp.allclose(XR[k], rXR[k], atol=tol, rtol=tol)
            assert jnp.allclose(ZR[k], rZR[k], atol=tol, rtol=tol)

    # f32 compute path: exact semantics, tight tolerance.
    out_f32 = dmscnet_forward(X, cae_params, coef, knn, compute_dtype=jnp.float32)
    jax.block_until_ready(out_f32)
    _check(out_f32, 1e-3)

    # default bf16 MXU fast path: same plumbing, bf16-appropriate tolerance.
    out_bf16 = dmscnet_forward(X, cae_params, coef, knn)
    jax.block_until_ready(out_bf16)
    _check(out_bf16, 5e-2)

    print("KERNEL_OK")
</pallas_src>

<mosaic_0001>
module attributes {stable_mosaic.version = 11 : i64} {
  func.func @_encoder_kernel(%arg0: i32, %arg1: i32, %arg2: memref<1x32x128xf32, #tpu.memory_space<vmem>>, %arg3: memref<1x128x128xf32, #tpu.memory_space<vmem>>, %arg4: memref<1x1x128xf32, #tpu.memory_space<vmem>>, %arg5: memref<1x128x128xf32, #tpu.memory_space<vmem>>, %arg6: memref<1x1x128xf32, #tpu.memory_space<vmem>>, %arg7: memref<32x128xf32, #tpu.memory_space<vmem>>) attributes {dimension_semantics = [#tpu.dimension_semantics<parallel>, #tpu.dimension_semantics<parallel>], iteration_bounds = array<i64: 2, 4>, scalar_prefetch = 0 : i64, scratch_operands = 0 : i64, tpu.core_type = #tpu.core_type<tc>, window_params = [{transform_indices = @transform_0, window_bounds = array<i64: 1, 32, 128>}, {transform_indices = @transform_1, window_bounds = array<i64: 1, 128, 128>}, {transform_indices = @transform_2, window_bounds = array<i64: 1, 1, 128>}, {transform_indices = @transform_3, window_bounds = array<i64: 1, 128, 128>}, {transform_indices = @transform_4, window_bounds = array<i64: 1, 1, 128>}, {transform_indices = @transform_5, window_bounds = array<i64: 32, 128>}]} {
    %c0 = arith.constant 0 : index
    %c0_0 = arith.constant 0 : index
    %c0_1 = arith.constant 0 : index
    %0 = vector.load %arg2[%c0, %c0_0, %c0_1] : memref<1x32x128xf32, #tpu.memory_space<vmem>>, vector<1x32x128xf32>
    %1 = vector.shape_cast %0 : vector<1x32x128xf32> to vector<32x128xf32>
    %c0_2 = arith.constant 0 : index
    %c0_3 = arith.constant 0 : index
    %c0_4 = arith.constant 0 : index
    %2 = vector.load %arg3[%c0_2, %c0_3, %c0_4] : memref<1x128x128xf32, #tpu.memory_space<vmem>>, vector<1x128x128xf32>
    %3 = vector.shape_cast %2 : vector<1x128x128xf32> to vector<128x128xf32>
    %c0_5 = arith.constant 0 : index
    %c0_6 = arith.constant 0 : index
    %c0_7 = arith.constant 0 : index
    %4 = vector.load %arg4[%c0_5, %c0_6, %c0_7] : memref<1x1x128xf32, #tpu.memory_space<vmem>>, vector<1x1x128xf32>
    %5 = vector.shape_cast %4 : vector<1x1x128xf32> to vector<1x128xf32>
    %c0_8 = arith.constant 0 : index
    %c0_9 = arith.constant 0 : index
    %c0_10 = arith.constant 0 : index
    %6 = vector.load %arg5[%c0_8, %c0_9, %c0_10] : memref<1x128x128xf32, #tpu.memory_space<vmem>>, vector<1x128x128xf32>
    %7 = vector.shape_cast %6 : vector<1x128x128xf32> to vector<128x128xf32>
    %c0_11 = arith.constant 0 : index
    %c0_12 = arith.constant 0 : index
    %c0_13 = arith.constant 0 : index
    %8 = vector.load %arg6[%c0_11, %c0_12, %c0_13] : memref<1x1x128xf32, #tpu.memory_space<vmem>>, vector<1x1x128xf32>
    %9 = vector.shape_cast %8 : vector<1x1x128xf32> to vector<1x128xf32>
    %cst = arith.constant dense<0.000000e+00> : vector<32x128xf32>
    %10 = tpu.matmul %1, %3, %cst {dimension_numbers = #tpu.dot_dimension_numbers<[1], [0], [0], [1], [0, 0, 1, 1], [], []>} : vector<32x128xf32>, vector<128x128xf32>, vector<32x128xf32> -> vector<32x128xf32>
    %11 = vector.broadcast %5 : vector<1x128xf32> to vector<32x128xf32>
    %12 = arith.addf %10, %11 : vector<32x128xf32>
    %cst_14 = arith.constant 0.000000e+00 : f32
    %13 = vector.broadcast %cst_14 : f32 to vector<32x128xf32>
    %14 = arith.cmpf ogt, %12, %13 : vector<32x128xf32>
    %cst_15 = arith.constant 0.00999999977 : f32
    %15 = vector.broadcast %cst_15 : f32 to vector<32x128xf32>
    %16 = arith.mulf %15, %12 : vector<32x128xf32>
    %17 = arith.select %14, %12, %16 : vector<32x128xi1>, vector<32x128xf32>
    %cst_16 = arith.constant dense<0.000000e+00> : vector<32x128xf32>
    %18 = tpu.matmul %17, %7, %cst_16 {dimension_numbers = #tpu.dot_dimension_numbers<[1], [0], [0], [1], [0, 0, 1, 1], [], []>} : vector<32x128xf32>, vector<128x128xf32>, vector<32x128xf32> -> vector<32x128xf32>
    %19 = vector.broadcast %9 : vector<1x128xf32> to vector<32x128xf32>
    %20 = arith.addf %18, %19 : vector<32x128xf32>
    %21 = arith.negf %20 : vector<32x128xf32>
    %22 = math.exp %21 : vector<32x128xf32>
    %cst_17 = arith.constant 1.000000e+00 : f32
    %23 = vector.broadcast %cst_17 : f32 to vector<32x128xf32>
    %24 = arith.addf %23, %22 : vector<32x128xf32>
    %25 = arith.divf %23, %24 : vector<32x128xf32>
    %c0_18 = arith.constant 0 : index
    %c0_19 = arith.constant 0 : index
    %26 = vector.load %arg7[%c0_18, %c0_19] : memref<32x128xf32, #tpu.memory_space<vmem>>, vector<32x128xf32>
    tpu.vector_store %arg7[%c0_18, %c0_19], %25 {strides = array<i32>} : memref<32x128xf32, #tpu.memory_space<vmem>>, vector<32x128xf32>,
    return
  }
  func.func @transform_0(%arg0: i32, %arg1: i32) -> (i32, i32, i32) {
    %c0_i32 = arith.constant 0 : i32
    %c0_i32_0 = arith.constant 0 : i32
    return %arg0, %arg1, %c0_i32 : i32, i32, i32
  }
  func.func @transform_1(%arg0: i32, %arg1: i32) -> (i32, i32, i32) {
    %c0_i32 = arith.constant 0 : i32
    %c0_i32_0 = arith.constant 0 : i32
    %c0_i32_1 = arith.constant 0 : i32
    return %arg0, %c0_i32, %c0_i32_0 : i32, i32, i32
  }
  func.func @transform_2(%arg0: i32, %arg1: i32) -> (i32, i32, i32) {
    %c0_i32 = arith.constant 0 : i32
    %c0_i32_0 = arith.constant 0 : i32
    %c0_i32_1 = arith.constant 0 : i32
    return %arg0, %c0_i32, %c0_i32_0 : i32, i32, i32
  }
  func.func @transform_3(%arg0: i32, %arg1: i32) -> (i32, i32, i32) {
    %c0_i32 = arith.constant 0 : i32
    %c0_i32_0 = arith.constant 0 : i32
    %c0_i32_1 = arith.constant 0 : i32
    return %arg0, %c0_i32, %c0_i32_0 : i32, i32, i32
  }
  func.func @transform_4(%arg0: i32, %arg1: i32) -> (i32, i32, i32) {
    %c0_i32 = arith.constant 0 : i32
    %c0_i32_0 = arith.constant 0 : i32
    %c0_i32_1 = arith.constant 0 : i32
    return %arg0, %c0_i32, %c0_i32_0 : i32, i32, i32
  }
  func.func @transform_5(%arg0: i32, %arg1: i32) -> (i32, i32) {
    %c0_i32 = arith.constant 0 : i32
    return %arg1, %arg0 : i32, i32
  }
}

</mosaic_0001>

<llo_original>
// kernel: tpu_custom_call.1
$region0: #{tpu_custom_call.1}
  #allocation0 [shape = 'u32[]', space=smem, size = 0x4, offset = 0x4, fixed_abs, tag = 'smem constant byte address 0x4 - core index']
  #allocation1 [shape = 'u32[144,128]{1,0:T(1,128)}', space=vmem, size = 0x12000, scoped, tag = 'internal scratch']
  %s0 = inlined_call_operand.hbm [shape: f32[2,128,128], index: 0, kind: input, shape index: {}]
  %s1 = inlined_call_operand.hbm [shape: f32[2,128,128], index: 1, kind: input, shape index: {}]
  %s2 = inlined_call_operand.vmem [shape: f32[2,1,128], index: 2, kind: input, shape index: {}]
  %s3 = inlined_call_operand.hbm [shape: f32[2,128,128], index: 3, kind: input, shape index: {}]
  %s4 = inlined_call_operand.vmem [shape: f32[2,1,128], index: 4, kind: input, shape index: {}]
  %s5 = inlined_call_operand.hbm [shape: f32[128,256], index: 5, kind: output, shape index: {}]
  %s6 = sld [smem:[#allocation0]]
  $region65: #{tpu_custom_call.1} parent=0
    _
  %s8 = ssub.s32 1, %s6
  %s9 = scalar_select 0, %s8, %s6
  $region1: #{tpu_custom_call.1} parent=0
    #allocation2 [shape = 'u8[32768]{0}', space=vmem, size = 0x8000, scoped, tag = 'input window, operand 0']
    #allocation3 [shape = 's32[2]{0}', space=sflag, size = 0x8, scoped, tag = 'scoped memory for tpu_custom_call.1']
    #allocation4 [shape = 's32[2]{0}', space=sflag, size = 0x8, scoped, tag = 'scoped memory for tpu_custom_call.1']
    #allocation5 [shape = 'u8[131072]{0}', space=vmem, size = 0x20000, scoped, tag = 'input window, operand 1']
    #allocation6 [shape = 's32[2]{0}', space=sflag, size = 0x8, scoped, tag = 'scoped memory for tpu_custom_call.1']
    #allocation7 [shape = 'u8[131072]{0}', space=vmem, size = 0x20000, scoped, tag = 'input window, operand 3']
    #allocation8 [shape = 'u8[32768]{0}', space=vmem, size = 0x8000, scoped, tag = 'output window, operand 0']
    %10 = vsyncpa [#allocation3], 0
    %s11 = scalar_lea.sflag [#allocation3], 1
    %12 = vsyncpa %s11, 0
    %13 = vsyncpa [#allocation6], 0
    %s14 = scalar_lea.sflag [#allocation6], 1
    %15 = vsyncpa %s14, 0
    %16 = vsyncpa [#allocation4], 0
    %s17 = scalar_lea.sflag [#allocation4], 1
    %18 = vsyncpa %s17, 0
    loop: start=0, step=1, limit=10
    $region2: #{tpu_custom_call.1} parent=1 // loop_pre_header
      _
    $region3: #{tpu_custom_call.1} parent=1 // loop_header
      %s20 = sphi 0, %s24
      %p21 = scmp.ge.s32.totalorder %s20, 10
      %s27 = sphi 0, %s39
      %s28 = sphi 0, %s35
      %s29 = sphi 0, %s27
      %s30 = sphi 0, %s28
      %s31 = sphi 0, %s29
      %s32 = sphi 0, %s30
      %s44 = sphi 0, %s46
      %s47 = sphi 0, %s44
      %s48 = sphi 0, %s47
      %s64 = sphi 0, %s48
      %s70 = sphi 0, %s72
      %s73 = sphi 0, %s70
      %s74 = sphi 0, %s73
      %s90 = sphi 0, %s74
      %s96 = sphi 0, %s98
      %s99 = sphi 0, %s96
      %s100 = sphi 0, %s99
      %s116 = sphi 0, %s100
      %s122 = sphi 0, %s124
      %s125 = sphi 0, %s122
      %s126 = sphi 0, %s125
      %s142 = sphi 0, %s126
      %s148 = sphi 0, %s150
      %s151 = sphi 0, %s148
      %s152 = sphi 0, %s151
      %s168 = sphi 0, %s152
      %s176 = sphi 0, %s178
      %s179 = sphi 0, %s176
      %s180 = sphi 0, %s179
      %s196 = sphi 0, %s180
    $region4: #{tpu_custom_call.1} parent=1 // loop_header_branch
      %23 = sbr.rel (%p21) target = $region8
    $region5: #{tpu_custom_call.1} parent=1 // loop_body
      %s25 = ssub.s32 %s20, 1
      %s26 = ssub.s32 %s20, 2
      %s33 = sadd.s32 1, %s28
      %p34 = scmp.ge.s32.totalorder %s33, 4
      %s35 = scalar_select %p34, 0, %s33
      %s36 = sadd.s32 1, %s27
      %s37 = scalar_select %p34, %s36, %s27
      %p38 = scmp.ge.s32.totalorder %s37, 2
      %s39 = scalar_select %p38, 0, %s37
      %s40 = ssub.s32 %s27, %s39
      %s41 = ssub.s32 %s28, %s35
      %s42 = sor.u32 %s40, %s41
      %p43 = scmp.eq.s32.totalorder %s42, 0
      %s45 = sadd.s32 %s44, 1
      %s46 = scalar_select %p43, %s44, %s45
      %p49 = pneg %p43
      %p50 = scmp.eq.s32.totalorder %s20, 7
      %p51 = por %p49, %p50
      %p52 = scmp.ne.s32.totalorder %s44, %s47
      %p53 = scmp.eq.s32.totalorder %s20, 0
      %p54 = por %p52, %p53
      %p55 = scmp.ne.s32.totalorder %s44, %s47
      %p56 = scmp.eq.s32.totalorder %s25, 7
      %p57 = por %p55, %p56
      %p58 = scmp.ne.s32.totalorder %s47, %s48
      %p59 = scmp.eq.s32.totalorder %s25, 0
      %p60 = por %p58, %p59
      %p61 = scmp.ne.s32.totalorder %s47, %s48
      %p62 = scmp.eq.s32.totalorder %s26, 7
      %p63 = por %p61, %p62
      %p65 = scmp.ne.s32.totalorder %s48, %s64
      %p66 = scmp.eq.s32.totalorder %s26, 0
      %p67 = por %p65, %p66
      %s68 = ssub.s32 %s27, %s39
      %p69 = scmp.eq.s32.totalorder %s68, 0
      %s71 = sadd.s32 %s70, 1
      %s72 = scalar_select %p69, %s70, %s71
      %p75 = pneg %p69
      %p76 = scmp.eq.s32.totalorder %s20, 7
      %p77 = por %p75, %p76
      %p78 = scmp.ne.s32.totalorder %s70, %s73
      %p79 = scmp.eq.s32.totalorder %s20, 0
      %p80 = por %p78, %p79
      %p81 = scmp.ne.s32.totalorder %s70, %s73
      %p82 = scmp.eq.s32.totalorder %s25, 7
      %p83 = por %p81, %p82
      %p84 = scmp.ne.s32.totalorder %s73, %s74
      %p85 = scmp.eq.s32.totalorder %s25, 0
      %p86 = por %p84, %p85
      %p87 = scmp.ne.s32.totalorder %s73, %s74
      %p88 = scmp.eq.s32.totalorder %s26, 7
      %p89 = por %p87, %p88
      %p91 = scmp.ne.s32.totalorder %s74, %s90
      %p92 = scmp.eq.s32.totalorder %s26, 0
      %p93 = por %p91, %p92
      %s94 = ssub.s32 %s27, %s39
      %p95 = scmp.eq.s32.totalorder %s94, 0
      %s97 = sadd.s32 %s96, 1
      %s98 = scalar_select %p95, %s96, %s97
      %p101 = pneg %p95
      %p102 = scmp.eq.s32.totalorder %s20, 7
      %p103 = por %p101, %p102
      %p104 = scmp.ne.s32.totalorder %s96, %s99
      %p105 = scmp.eq.s32.totalorder %s20, 0
      %p106 = por %p104, %p105
      %p107 = scmp.ne.s32.totalorder %s96, %s99
      %p108 = scmp.eq.s32.totalorder %s25, 7
      %p109 = por %p107, %p108
      %p110 = scmp.ne.s32.totalorder %s99, %s100
      %p111 = scmp.eq.s32.totalorder %s25, 0
      %p112 = por %p110, %p111
      %p113 = scmp.ne.s32.totalorder %s99, %s100
      %p114 = scmp.eq.s32.totalorder %s26, 7
      %p115 = por %p113, %p114
      %p117 = scmp.ne.s32.totalorder %s100, %s116
      %p118 = scmp.eq.s32.totalorder %s26, 0
      %p119 = por %p117, %p118
      %s120 = ssub.s32 %s27, %s39
      %p121 = scmp.eq.s32.totalorder %s120, 0
      %s123 = sadd.s32 %s122, 1
      %s124 = scalar_select %p121, %s122, %s123
      %p127 = pneg %p121
      %p128 = scmp.eq.s32.totalorder %s20, 7
      %p129 = por %p127, %p128
      %p130 = scmp.ne.s32.totalorder %s122, %s125
      %p131 = scmp.eq.s32.totalorder %s20, 0
      %p132 = por %p130, %p131
      %p133 = scmp.ne.s32.totalorder %s122, %s125
      %p134 = scmp.eq.s32.totalorder %s25, 7
      %p135 = por %p133, %p134
      %p136 = scmp.ne.s32.totalorder %s125, %s126
      %p137 = scmp.eq.s32.totalorder %s25, 0
      %p138 = por %p136, %p137
      %p139 = scmp.ne.s32.totalorder %s125, %s126
      %p140 = scmp.eq.s32.totalorder %s26, 7
      %p141 = por %p139, %p140
      %p143 = scmp.ne.s32.totalorder %s126, %s142
      %p144 = scmp.eq.s32.totalorder %s26, 0
      %p145 = por %p143, %p144
      %s146 = ssub.s32 %s27, %s39
      %p147 = scmp.eq.s32.totalorder %s146, 0
      %s149 = sadd.s32 %s148, 1
      %s150 = scalar_select %p147, %s148, %s149
      %p153 = pneg %p147
      %p154 = scmp.eq.s32.totalorder %s20, 7
      %p155 = por %p153, %p154
      %p156 = scmp.ne.s32.totalorder %s148, %s151
      %p157 = scmp.eq.s32.totalorder %s20, 0
      %p158 = por %p156, %p157
      %p159 = scmp.ne.s32.totalorder %s148, %s151
      %p160 = scmp.eq.s32.totalorder %s25, 7
      %p161 = por %p159, %p160
      %p162 = scmp.ne.s32.totalorder %s151, %s152
      %p163 = scmp.eq.s32.totalorder %s25, 0
      %p164 = por %p162, %p163
      %p165 = scmp.ne.s32.totalorder %s151, %s152
      %p166 = scmp.eq.s32.totalorder %s26, 7
      %p167 = por %p165, %p166
      %p169 = scmp.ne.s32.totalorder %s152, %s168
      %p170 = scmp.eq.s32.totalorder %s26, 0
      %p171 = por %p169, %p170
      %s172 = ssub.s32 %s28, %s35
      %s173 = ssub.s32 %s27, %s39
      %s174 = sor.u32 %s172, %s173
      %p175 = scmp.eq.s32.totalorder %s174, 0
      %s177 = sadd.s32 %s176, 1
      %s178 = scalar_select %p175, %s176, %s177
      %p181 = pneg %p175
      %p182 = scmp.eq.s32.totalorder %s20, 7
      %p183 = por %p181, %p182
      %p184 = scmp.ne.s32.totalorder %s176, %s179
      %p185 = scmp.eq.s32.totalorder %s20, 0
      %p186 = por %p184, %p185
      %p187 = scmp.ne.s32.totalorder %s176, %s179
      %p188 = scmp.eq.s32.totalorder %s25, 7
      %p189 = por %p187, %p188
      %p190 = scmp.ne.s32.totalorder %s179, %s180
      %p191 = scmp.eq.s32.totalorder %s25, 0
      %p192 = por %p190, %p191
      %p193 = scmp.ne.s32.totalorder %s179, %s180
      %p194 = scmp.eq.s32.totalorder %s26, 7
      %p195 = por %p193, %p194
      %p197 = scmp.ne.s32.totalorder %s180, %s196
      %p198 = scmp.eq.s32.totalorder %s26, 0
      %p199 = por %p197, %p198
      %p200 = scmp.le.s32.totalorder 1, %s20
      %p201 = scmp.lt.s32.totalorder %s20, 9
      %p202 = pnand %p200, %p201
      %p203 = pneg %p202
      // Predicated region
      $region9: #{tpu_custom_call.1} parent=5 // pred_check
        _
      $region10: #{tpu_custom_call.1} parent=5 // pred_check_branch
        %205 = sbr.rel (%p202) target = $region12
      $region11: #{tpu_custom_call.1} parent=5 // pred_region
        %s206 = ssub.s32 %s20, 1
      $region12: #{tpu_custom_call.1} parent=5 // pred_fallthru
        _
      %p207 = scmp.lt.s32.totalorder %s20, 8
      // Predicated region
      $region13: #{tpu_custom_call.1} parent=5 // pred_check
        %p208 = pneg %p207
      $region14: #{tpu_custom_call.1} parent=5 // pred_check_branch
        %210 = sbr.rel (%p208) target = $region16
      $region15: #{tpu_custom_call.1} parent=5 // pred_region
        // Predicated region
        $region17: #{tpu_custom_call.1} parent=15 // pred_check
          %p211 = pneg %p54
        $region18: #{tpu_custom_call.1} parent=15 // pred_check_branch
          %213 = sbr.rel (%p211) target = $region20
        $region19: #{tpu_custom_call.1} parent=15 // pred_region
          %s214 = sand.u32 %s44, 1
          %s215 = scalar_lea.sflag [#allocation3], %s214
          %s216 = sand.u32 %s44, 1
          %s217 = smul.addr %s216, 32
          %s218 = scalar_lea.vmem [#allocation2], %s217
          %s219 = smul.u32 4, %s28
          %s221 = ssub.s32 512, 512
          %222 = vsyncadd %s215, %s221
          %s223 = smul.addr %s27, 16
          %s224 = sadd.s32 %s219, %s223
          %s225 = smul.addr %s224, 128
          %s226 = scalar_lea.hbm %s0, %s225
          %s227 = sshll.u32 %s218, 4
          %s228 = int_to_ptr.vmem [resolvable:$true] %s227
          %233 = dma.hbm_to_vmem [thread:$0]  %s226, 512, %s228, %s215, 128, 128, 8
        $region20: #{tpu_custom_call.1} parent=15 // pred_fallthru
          _
        // Predicated region
        $region21: #{tpu_custom_call.1} parent=15 // pred_check
          %p234 = pneg %p80
        $region22: #{tpu_custom_call.1} parent=15 // pred_check_branch
          %236 = sbr.rel (%p234) target = $region24
        $region23: #{tpu_custom_call.1} parent=15 // pred_region
          %s237 = sand.u32 %s20, 1
          %s238 = scalar_lea.sflag [#allocation6], %s237
          %s239 = sand.u32 %s70, 1
          %s240 = smul.addr %s239, 128
          %s241 = scalar_lea.vmem [#allocation5], %s240
          %s243 = ssub.s32 2048, 2048
          %244 = vsyncadd %s238, %s243
          %s245 = smul.addr %s27, 16
          %s246 = smul.addr %s245, 128
          %s247 = scalar_lea.hbm %s1, %s246
          %s248 = sshll.u32 %s241, 4
          %s249 = int_to_ptr.vmem [resolvable:$true] %s248
          %254 = dma.hbm_to_vmem [thread:$0]  %s247, 2048, %s249, %s238, 128, 128, 8
        $region24: #{tpu_custom_call.1} parent=15 // pred_fallthru
          _
        // Predicated region
        $region25: #{tpu_custom_call.1} parent=15 // pred_check
          %p255 = pneg %p106
        $region26: #{tpu_custom_call.1} parent=15 // pred_check_branch
          %257 = sbr.rel (%p255) target = $region28
        $region27: #{tpu_custom_call.1} parent=15 // pred_region
          %p258 = scmp.lt.s32.totalorder %s27, 1
          %s259 = scalar_select %p258, %s27, 1
          %s260 = scalar_lea.vmem %s2, %s259
        $region28: #{tpu_custom_call.1} parent=15 // pred_fallthru
          _
        // Predicated region
        $region29: #{tpu_custom_call.1} parent=15 // pred_check
          %p261 = pneg %p132
        $region30: #{tpu_custom_call.1} parent=15 // pred_check_branch
          %263 = sbr.rel (%p261) target = $region32
        $region31: #{tpu_custom_call.1} parent=15 // pred_region
          %s264 = sand.u32 %s20, 1
          %s265 = scalar_lea.sflag [#allocation6], %s264
          %s266 = sand.u32 %s122, 1
          %s267 = smul.addr %s266, 128
          %s268 = scalar_lea.vmem [#allocation7], %s267
          %s270 = ssub.s32 2048, 2048
          %271 = vsyncadd %s265, %s270
          %s272 = smul.addr %s27, 16
          %s273 = smul.addr %s272, 128
          %s274 = scalar_lea.hbm %s3, %s273
          %s275 = sshll.u32 %s268, 4
          %s276 = int_to_ptr.vmem [resolvable:$true] %s275
          %281 = dma.hbm_to_vmem [thread:$0]  %s274, 2048, %s276, %s265, 128, 128, 8
        $region32: #{tpu_custom_call.1} parent=15 // pred_fallthru
          _
        // Predicated region
        $region33: #{tpu_custom_call.1} parent=15 // pred_check
          %p282 = pneg %p158
        $region34: #{tpu_custom_call.1} parent=15 // pred_check_branch
          %284 = sbr.rel (%p282) target = $region36
        $region35: #{tpu_custom_call.1} parent=15 // pred_region
          %p285 = scmp.lt.s32.totalorder %s27, 1
          %s286 = scalar_select %p285, %s27, 1
          %s287 = scalar_lea.vmem %s4, %s286
        $region36: #{tpu_custom_call.1} parent=15 // pred_fallthru
          _
      $region16: #{tpu_custom_call.1} parent=5 // pred_fallthru
        _
      %p288 = scmp.le.s32.totalorder 1, %s20
      %p289 = scmp.lt.s32.totalorder %s20, 9
      %p290 = pnand %p288, %p289
      %p291 = pneg %p290
      // Predicated region
      $region37: #{tpu_custom_call.1} parent=5 // pred_check
        _
      $region38: #{tpu_custom_call.1} parent=5 // pred_check_branch
        %293 = sbr.rel (%p290) target = $region40
      $region39: #{tpu_custom_call.1} parent=5 // pred_region
        %s294 = ssub.s32 %s20, 1
        %s295 = sand.u32 %s47, 1
        %s296 = scalar_lea.sflag [#allocation3], %s295
        %s297 = sand.u32 %s47, 1
        %s298 = smul.addr %s297, 32
        %s299 = scalar_lea.vmem [#allocation2], %s298
        // Predicated region
        $region41: #{tpu_custom_call.1} parent=39 // pred_check
          %p300 = pneg %p60
        $region42: #{tpu_custom_call.1} parent=39 // pred_check_branch
          %302 = sbr.rel (%p300) target = $region44
        $region43: #{tpu_custom_call.1} parent=39 // pred_region
          %303 = dma.done %s296, 512
        $region44: #{tpu_custom_call.1} parent=39 // pred_fallthru
          _
        %s304 = sand.u32 %s25, 1
        %s305 = scalar_lea.sflag [#allocation6], %s304
        %s306 = sand.u32 %s73, 1
        %s307 = smul.addr %s306, 128
        %s308 = scalar_lea.vmem [#allocation5], %s307
        // Predicated region
        $region45: #{tpu_custom_call.1} parent=39 // pred_check
          %p309 = pneg %p86
        $region46: #{tpu_custom_call.1} parent=39 // pred_check_branch
          %311 = sbr.rel (%p309) target = $region48
        $region47: #{tpu_custom_call.1} parent=39 // pred_region
          %312 = dma.done %s305, 2048
        $region48: #{tpu_custom_call.1} parent=39 // pred_fallthru
          _
        %s313 = sand.u32 %s25, 1
        %s314 = scalar_lea.sflag [#allocation6], %s313
        %s315 = sand.u32 %s125, 1
        %s316 = smul.addr %s315, 128
        %s317 = scalar_lea.vmem [#allocation7], %s316
        // Predicated region
        $region49: #{tpu_custom_call.1} parent=39 // pred_check
          %p318 = pneg %p138
        $region50: #{tpu_custom_call.1} parent=39 // pred_check_branch
          %320 = sbr.rel (%p318) target = $region52
        $region51: #{tpu_custom_call.1} parent=39 // pred_region
          %321 = dma.done %s314, 2048
        $region52: #{tpu_custom_call.1} parent=39 // pred_fallthru
          _
        %s322 = sand.u32 %s47, 1
        %s323 = scalar_lea.sflag [#allocation3], %s322
        %s324 = sand.u32 %s47, 1
        %s325 = smul.addr %s324, 32
        %s326 = scalar_lea.vmem [#allocation2], %s325
        %p327 = pneg %p60
        %p328 = pneg %p57
        %s329 = sand.u32 %s25, 1
        %s330 = scalar_lea.sflag [#allocation6], %s329
        %s331 = sand.u32 %s73, 1
        %s332 = smul.addr %s331, 128
        %s333 = scalar_lea.vmem [#allocation5], %s332
        %p334 = pneg %p86
        %p335 = pneg %p83
        %p336 = scmp.lt.s32.totalorder %s29, 1
        %s337 = scalar_select %p336, %s29, 1
        %s338 = scalar_lea.vmem %s2, %s337
        %p339 = pneg %p112
        %p340 = pneg %p109
        %s341 = sand.u32 %s25, 1
        %s342 = scalar_lea.sflag [#allocation6], %s341
        %s343 = sand.u32 %s125, 1
        %s344 = smul.addr %s343, 128
        %s345 = scalar_lea.vmem [#allocation7], %s344
        %p346 = pneg %p138
        %p347 = pneg %p135
        %p348 = scmp.lt.s32.totalorder %s29, 1
        %s349 = scalar_select %p348, %s29, 1
        %s350 = scalar_lea.vmem %s4, %s349
        %p351 = pneg %p164
        %p352 = pneg %p161
        %p353 = pneg %p192
        %p354 = pneg %p189
        %s355 = sand.u32 %s179, 1
        %s356 = scalar_lea.sflag [#allocation4], %s355
        %s357 = sand.u32 %s179, 1
        %s358 = smul.addr %s357, 32
        %s359 = scalar_lea.vmem [#allocation8], %s358
        %s360 = smul.u32 4, %s30
        %p361 = scmp.lt.s32.totalorder %s29, 1
        %s362 = scalar_select %p361, %s29, 1
        %s363 = scalar_lea.vmem %s2, %s362
        %p364 = scmp.lt.s32.totalorder %s29, 1
        %s365 = scalar_select %p364, %s29, 1
        %s366 = scalar_lea.vmem %s4, %s365
        %s367 = smul.u32 4, %s30
        %v368 = vld [vmem:[%s299] sm:$0xff]
        %v369 = vld [vmem:[%s299 + $0x8] sm:$0xff]
        %v370 = vld [vmem:[%s299 + $0x10] sm:$0xff]
        %v371 = vld [vmem:[%s299 + $0x18] sm:$0xff]
        %v372 = vld [vmem:[%s308] sm:$0xff]
        %v373 = vld [vmem:[%s308 + $0x8] sm:$0xff]
        %v374 = vld [vmem:[%s308 + $0x10] sm:$0xff]
        %v375 = vld [vmem:[%s308 + $0x18] sm:$0xff]
        %v376 = vld [vmem:[%s308 + $0x20] sm:$0xff]
        %v377 = vld [vmem:[%s308 + $0x28] sm:$0xff]
        %v378 = vld [vmem:[%s308 + $0x30] sm:$0xff]
        %v379 = vld [vmem:[%s308 + $0x38] sm:$0xff]
        %v380 = vld [vmem:[%s308 + $0x40] sm:$0xff]
        %v381 = vld [vmem:[%s308 + $0x48] sm:$0xff]
        %v382 = vld [vmem:[%s308 + $0x50] sm:$0xff]
        %v383 = vld [vmem:[%s308 + $0x58] sm:$0xff]
        %v384 = vld [vmem:[%s308 + $0x60] sm:$0xff]
        %v385 = vld [vmem:[%s308 + $0x68] sm:$0xff]
        %v386 = vld [vmem:[%s308 + $0x70] sm:$0xff]
        %v387 = vld [vmem:[%s308 + $0x78] sm:$0xff]
        %v388 = vld [vmem:[%s363] sm:$0x1]
        %v389 = vld [vmem:[%s317] sm:$0xff]
        %v390 = vld [vmem:[%s317 + $0x8] sm:$0xff]
        %v391 = vld [vmem:[%s317 + $0x10] sm:$0xff]
        %v392 = vld [vmem:[%s317 + $0x18] sm:$0xff]
        %v393 = vld [vmem:[%s317 + $0x20] sm:$0xff]
        %v394 = vld [vmem:[%s317 + $0x28] sm:$0xff]
        %v395 = vld [vmem:[%s317 + $0x30] sm:$0xff]
        %v396 = vld [vmem:[%s317 + $0x38] sm:$0xff]
        %v397 = vld [vmem:[%s317 + $0x40] sm:$0xff]
        %v398 = vld [vmem:[%s317 + $0x48] sm:$0xff]
        %v399 = vld [vmem:[%s317 + $0x50] sm:$0xff]
        %v400 = vld [vmem:[%s317 + $0x58] sm:$0xff]
        %v401 = vld [vmem:[%s317 + $0x60] sm:$0xff]
        %v402 = vld [vmem:[%s317 + $0x68] sm:$0xff]
        %v403 = vld [vmem:[%s317 + $0x70] sm:$0xff]
        %v404 = vld [vmem:[%s317 + $0x78] sm:$0xff]
        %v405 = vld [vmem:[%s366] sm:$0x1]
        %v407 = vlaneseq
        %v408 = vshrl.u32 %v407, 7
        %v409 = vsub.s32 0, %v408
        %v410 = vrot.slane %v388, %v409
        %412 = vmatprep.subr.mxu0 0.0
        %413 = vmatpush1.msra.mxu0 %v387
        %414 = vmatprep.subr.mxu0 0.0
        %415 = vmatpush1.msra.mxu0 %v386
        %416 = vmatprep.subr.mxu0 0.0
        %417 = vmatpush1.msra.mxu0 %v385
        %418 = vmatprep.subr.mxu0 0.0
        %419 = vmatpush1.msra.mxu0 %v384
        %420 = vmatprep.subr.mxu0 0.0
        %421 = vmatpush1.msra.mxu0 %v383
        %422 = vmatprep.subr.mxu0 0.0
        %423 = vmatpush1.msra.mxu0 %v382
        %424 = vmatprep.subr.mxu0 0.0
        %425 = vmatpush1.msra.mxu0 %v381
        %426 = vmatprep.subr.mxu0 0.0
        %427 = vmatpush1.msra.mxu0 %v380
        %428 = vmatprep.subr.mxu0 0.0
        %429 = vmatpush1.msra.mxu0 %v379
        %430 = vmatprep.subr.mxu0 0.0
        %431 = vmatpush1.msra.mxu0 %v378
        %432 = vmatprep.subr.mxu0 0.0
        %433 = vmatpush1.msra.mxu0 %v377
        %434 = vmatprep.subr.mxu0 0.0
        %435 = vmatpush1.msra.mxu0 %v376
        %436 = vmatprep.subr.mxu0 0.0
        %437 = vmatpush1.msra.mxu0 %v375
        %438 = vmatprep.subr.mxu0 0.0
        %439 = vmatpush1.msra.mxu0 %v374
        %440 = vmatprep.subr.mxu0 0.0
        %441 = vmatpush1.msra.mxu0 %v373
        %442 = vmatprep.subr.mxu0 0.0
        %443 = vmatpush1.msra.mxu0 %v372
        %444 = vmatprep.subr.mxu0 0.0
        %445 = vmatpush2.msra.mxu0 0.0
        %446 = vmatprep.subr.mxu0 0.0
        %447 = vmatpush2.msra.mxu0 0.0
        %448 = vmatprep.subr.mxu0 0.0
        %449 = vmatpush2.msra.mxu0 0.0
        %450 = vmatprep.subr.mxu0 0.0
        %451 = vmatpush2.msra.mxu0 0.0
        %452 = vmatprep.subr.mxu0 0.0
        %453 = vmatpush2.msra.mxu0 0.0
        %454 = vmatprep.subr.mxu0 0.0
        %455 = vmatpush2.msra.mxu0 0.0
        %456 = vmatprep.subr.mxu0 0.0
        %457 = vmatpush2.msra.mxu0 0.0
        %458 = vmatprep.subr.mxu0 0.0
        %459 = vmatpush2.msra.mxu0 0.0
        %460 = vmatprep.subr.mxu0 0.0
        %461 = vmatpush2.msra.mxu0 0.0
        %462 = vmatprep.subr.mxu0 0.0
        %463 = vmatpush2.msra.mxu0 0.0
        %464 = vmatprep.subr.mxu0 0.0
        %465 = vmatpush2.msra.mxu0 0.0
        %466 = vmatprep.subr.mxu0 0.0
        %467 = vmatpush2.msra.mxu0 0.0
        %468 = vmatprep.subr.mxu0 0.0
        %469 = vmatpush2.msra.mxu0 0.0
        %470 = vmatprep.subr.mxu0 0.0
        %471 = vmatpush2.msra.mxu0 0.0
        %472 = vmatprep.subr.mxu0 0.0
        %473 = vmatpush2.msra.mxu0 0.0
        %474 = vmatprep.subr.mxu0 0.0
        %475 = vmatpush2.msra.mxu0 0.0
        %476 = vmatprep.mubr.f32.mxu0 0.0
        %477 = vmatmul.mubr.f32.gmra.mxu0 %v368
        %v478 = vpop.f32.mrf.mxu0
        %v479 = vadd.f32 %v410, %v478
        %v480 = vpop.f32.mrf.mxu0
        %481 = vmatprep.mubr.f32.mxu0 0.0
        %482 = vmatmul.mubr.f32.gmra.mxu0 %v369
        %v483 = vpop.f32.mrf.mxu0
        %v484 = vadd.f32 %v410, %v483
        %v485 = vpop.f32.mrf.mxu0
        %486 = vmatprep.mubr.f32.mxu0 0.0
        %487 = vmatmul.mubr.f32.gmra.mxu0 %v370
        %v488 = vpop.f32.mrf.mxu0
        %v489 = vadd.f32 %v410, %v488
        %v490 = vpop.f32.mrf.mxu0
        %491 = vmatprep.mubr.f32.mxu0 0.0
        %492 = vmatmul.mubr.f32.gmra.mxu0 %v371
        %v493 = vpop.f32.mrf.mxu0
        %v494 = vadd.f32 %v410, %v493
        %v495 = vpop.f32.mrf.mxu0
        %496 = vdwg.mxu0
        %vm497 = vcmp.gt.f32.partialorder %v479, 0.0
        %vm498 = vcmp.gt.f32.partialorder %v484, 0.0
        %vm499 = vcmp.gt.f32.partialorder %v489, 0.0
        %vm500 = vcmp.gt.f32.partialorder %v494, 0.0
        %v501 = vmul.f32 %v479, 0.01
        %v502 = vmul.f32 %v484, 0.01
        %v503 = vmul.f32 %v489, 0.01
        %v504 = vmul.f32 %v494, 0.01
        %v505 = vsel %vm497, %v479, %v501
        %v506 = vsel %vm498, %v484, %v502
        %v507 = vsel %vm499, %v489, %v503
        %v508 = vsel %vm500, %v494, %v504
        %v510 = vlaneseq
        %v511 = vshrl.u32 %v510, 7
        %v512 = vsub.s32 0, %v511
        %v513 = vrot.slane %v405, %v512
        %515 = vmatprep.subr.mxu0 0.0
        %516 = vmatpush1.msra.mxu0 %v404
        %517 = vmatprep.subr.mxu0 0.0
        %518 = vmatpush1.msra.mxu0 %v403
        %519 = vmatprep.subr.mxu0 0.0
        %520 = vmatpush1.msra.mxu0 %v402
        %521 = vmatprep.subr.mxu0 0.0
        %522 = vmatpush1.msra.mxu0 %v401
        %523 = vmatprep.subr.mxu0 0.0
        %524 = vmatpush1.msra.mxu0 %v400
        %525 = vmatprep.subr.mxu0 0.0
        %526 = vmatpush1.msra.mxu0 %v399
        %527 = vmatprep.subr.mxu0 0.0
        %528 = vmatpush1.msra.mxu0 %v398
        %529 = vmatprep.subr.mxu0 0.0
        %530 = vmatpush1.msra.mxu0 %v397
        %531 = vmatprep.subr.mxu0 0.0
        %532 = vmatpush1.msra.mxu0 %v396
        %533 = vmatprep.subr.mxu0 0.0
        %534 = vmatpush1.msra.mxu0 %v395
        %535 = vmatprep.subr.mxu0 0.0
        %536 = vmatpush1.msra.mxu0 %v394
        %537 = vmatprep.subr.mxu0 0.0
        %538 = vmatpush1.msra.mxu0 %v393
        %539 = vmatprep.subr.mxu0 0.0
        %540 = vmatpush1.msra.mxu0 %v392
        %541 = vmatprep.subr.mxu0 0.0
        %542 = vmatpush1.msra.mxu0 %v391
        %543 = vmatprep.subr.mxu0 0.0
        %544 = vmatpush1.msra.mxu0 %v390
        %545 = vmatprep.subr.mxu0 0.0
        %546 = vmatpush1.msra.mxu0 %v389
        %547 = vmatprep.subr.mxu0 0.0
        %548 = vmatpush2.msra.mxu0 0.0
        %549 = vmatprep.subr.mxu0 0.0
        %550 = vmatpush2.msra.mxu0 0.0
        %551 = vmatprep.subr.mxu0 0.0
        %552 = vmatpush2.msra.mxu0 0.0
        %553 = vmatprep.subr.mxu0 0.0
        %554 = vmatpush2.msra.mxu0 0.0
        %555 = vmatprep.subr.mxu0 0.0
        %556 = vmatpush2.msra.mxu0 0.0
        %557 = vmatprep.subr.mxu0 0.0
        %558 = vmatpush2.msra.mxu0 0.0
        %559 = vmatprep.subr.mxu0 0.0
        %560 = vmatpush2.msra.mxu0 0.0
        %561 = vmatprep.subr.mxu0 0.0
        %562 = vmatpush2.msra.mxu0 0.0
        %563 = vmatprep.subr.mxu0 0.0
        %564 = vmatpush2.msra.mxu0 0.0
        %565 = vmatprep.subr.mxu0 0.0
        %566 = vmatpush2.msra.mxu0 0.0
        %567 = vmatprep.subr.mxu0 0.0
        %568 = vmatpush2.msra.mxu0 0.0
        %569 = vmatprep.subr.mxu0 0.0
        %570 = vmatpush2.msra.mxu0 0.0
        %571 = vmatprep.subr.mxu0 0.0
        %572 = vmatpush2.msra.mxu0 0.0
        %573 = vmatprep.subr.mxu0 0.0
        %574 = vmatpush2.msra.mxu0 0.0
        %575 = vmatprep.subr.mxu0 0.0
        %576 = vmatpush2.msra.mxu0 0.0
        %577 = vmatprep.subr.mxu0 0.0
        %578 = vmatpush2.msra.mxu0 0.0
        %579 = vmatprep.mubr.f32.mxu0 0.0
        %580 = vmatmul.mubr.f32.gmra.mxu0 %v505
        %v581 = vpop.f32.mrf.mxu0
        %v582 = vadd.f32 %v513, %v581
        %v583 = vpop.f32.mrf.mxu0
        %584 = vmatprep.mubr.f32.mxu0 0.0
        %585 = vmatmul.mubr.f32.gmra.mxu0 %v506
        %v586 = vpop.f32.mrf.mxu0
        %v587 = vadd.f32 %v513, %v586
        %v588 = vpop.f32.mrf.mxu0
        %589 = vmatprep.mubr.f32.mxu0 0.0
        %590 = vmatmul.mubr.f32.gmra.mxu0 %v507
        %v591 = vpop.f32.mrf.mxu0
        %v592 = vadd.f32 %v513, %v591
        %v593 = vpop.f32.mrf.mxu0
        %594 = vmatprep.mubr.f32.mxu0 0.0
        %595 = vmatmul.mubr.f32.gmra.mxu0 %v508
        %v596 = vpop.f32.mrf.mxu0
        %v597 = vadd.f32 %v513, %v596
        %v598 = vpop.f32.mrf.mxu0
        %599 = vdwg.mxu0
        %v600 = vxor.u32 %v582, 2147483648
        %v601 = vxor.u32 %v587, 2147483648
        %v602 = vxor.u32 %v592, 2147483648
        %v603 = vxor.u32 %v597, 2147483648
        %v604 = vmul.f32 %v600, 1.442695
        %v605 = vpow.pop %v604
        %v606 = vmul.f32 %v601, 1.442695
        %v607 = vpow.pop %v606
        %v608 = vmul.f32 %v602, 1.442695
        %v609 = vpow.pop %v608
        %v610 = vmul.f32 %v603, 1.442695
        %v611 = vpow.pop %v610
        %v612 = vadd.f32 %v605, 1.0
        %v613 = vadd.f32 %v607, 1.0
        %v614 = vadd.f32 %v609, 1.0
        %v615 = vadd.f32 %v611, 1.0
        %v616 = vrcp.pop %v612
        %v617 = vmul.f32 1.0, %v616
        %v618 = vrcp.pop %v613
        %v619 = vmul.f32 1.0, %v618
        %v620 = vrcp.pop %v614
        %v621 = vmul.f32 1.0, %v620
        %v622 = vrcp.pop %v615
        %v623 = vmul.f32 1.0, %v622
        %624 = vst [vmem:[%s359] sm:$0xff] %v617
        %625 = vst [vmem:[%s359 + $0x8] sm:$0xff] %v619
        %626 = vst [vmem:[%s359 + $0x10] sm:$0xff] %v621
        %627 = vst [vmem:[%s359 + $0x18] sm:$0xff] %v623
        %s628 = sand.u32 %s179, 1
        %s629 = scalar_lea.sflag [#allocation4], %s628
        %s630 = sand.u32 %s179, 1
        %s631 = smul.addr %s630, 32
        %s632 = scalar_lea.vmem [#allocation8], %s631
        // Predicated region
        $region53: #{tpu_custom_call.1} parent=39 // pred_check
          %p633 = pneg %p189
        $region54: #{tpu_custom_call.1} parent=39 // pred_check_branch
          %635 = sbr.rel (%p633) target = $region56
        $region55: #{tpu_custom_call.1} parent=39 // pred_region
          %s636 = smul.u32 4, %s30
          %s638 = ssub.s32 512, 512
          %639 = vsyncadd %s629, %s638
          %s640 = smul.addr %s636, 2
          %s641 = sadd.s32 %s29, %s640
          %s642 = smul.addr %s641, 128
          %s643 = scalar_lea.hbm %s5, %s642
          %s644 = sshll.u32 %s632, 4
          %s645 = int_to_ptr.vmem [resolvable:$true] %s644
          %650 = dma.vmem_to_hbm [thread:$0]  %s645, 512, %s643, %s629, 128, 256, 8
        $region56: #{tpu_custom_call.1} parent=39 // pred_fallthru
          _
      $region40: #{tpu_custom_call.1} parent=5 // pred_fallthru
        _
      %p651 = scmp.le.s32.totalorder 2, %s20
      // Predicated region
      $region57: #{tpu_custom_call.1} parent=5 // pred_check
        %p652 = pneg %p651
      $region58: #{tpu_custom_call.1} parent=5 // pred_check_branch
        %654 = sbr.rel (%p652) target = $region60
      $region59: #{tpu_custom_call.1} parent=5 // pred_region
        %s655 = ssub.s32 %s20, 2
        // Predicated region
        $region61: #{tpu_custom_call.1} parent=59 // pred_check
          %p656 = pneg %p195
        $region62: #{tpu_custom_call.1} parent=59 // pred_check_branch
          %658 = sbr.rel (%p656) target = $region64
        $region63: #{tpu_custom_call.1} parent=59 // pred_region
          %s659 = sand.u32 %s180, 1
          %s660 = scalar_lea.sflag [#allocation4], %s659
          %s661 = sand.u32 %s180, 1
          %s662 = smul.addr %s661, 32
          %s663 = scalar_lea.vmem [#allocation8], %s662
          %664 = dma.done %s660, 512
        $region64: #{tpu_custom_call.1} parent=59 // pred_fallthru
          _
      $region60: #{tpu_custom_call.1} parent=5 // pred_fallthru
        _
    $region6: #{tpu_custom_call.1} parent=1 // loop_footer
      %s24 = sadd.s32 1, %s20
    $region7: #{tpu_custom_call.1} parent=1 // loop_footer_branch
      %19 = sbr.rel target = $region3
    $region8: #{tpu_custom_call.1} parent=1 // loop_exit
      _
    %665 = vsyncpa [#allocation3], 1
    %s666 = scalar_lea.sflag [#allocation3], 1
    %667 = vsyncpa %s666, 1
    %668 = vsyncpa [#allocation6], 1
    %s669 = scalar_lea.sflag [#allocation6], 1
    %670 = vsyncpa %s669, 1
    %671 = vsyncpa [#allocation4], 1
    %s672 = scalar_lea.sflag [#allocation4], 1
    %673 = vsyncpa %s672, 1

</llo_original>
